<compile_context>
chip_gen: v7x
topology: tpu7x:2x2x1
jax: 0.10.0
libtpu: 0.0.40
codegen_flags: <defaults>
</compile_context>

<pallas_src>
import functools

import jax
import jax.numpy as jnp
from jax.experimental import pallas as pl
from jax.experimental.pallas import tpu as pltpu


def _block_kernel(x_ref, up_ref, dn_ref, wpos_ref, w_ref, b_ref, out_ref, ext_ref,
                  *, cin, cout, width, tm, lpad):
    """One (batch, row-tile) grid step.

    x_ref    : (1, Cin, TM)        f32   spatial tile (TM = rows_per_tile * W, whole rows)
    up_ref   : (1, 1, Cin, W)      f32   image row just above the tile (zeros at image top)
    dn_ref   : (1, 1, Cin, W)      f32   image row just below the tile (zeros at image bottom)
    wpos_ref : (1, TM)             int32 column index (w) of every lane
    w_ref    : (9, Cout, Cin)      bf16  conv weights, tap-major (k = 3*dy + dx)
    b_ref    : (Cout, 1)           f32   conv bias
    out_ref  : (1, Cout, TM)
    ext_ref  : (Cin, LPAD+TM+W+1)  bf16  scratch line: [pad | up halo | tile | down halo | pad]
    """
    x_t = x_ref[0]                                   # (Cin, TM) f32 (kept f32 for residual)
    up = up_ref[0, 0]                                # (Cin, W)  f32
    dn = dn_ref[0, 0]                                # (Cin, W)  f32

    # Assemble the haloed line in bf16.  The x tile lands at a 128-aligned lane offset.
    zcol = jnp.zeros((cin, 1), jnp.bfloat16)
    ext_ref[:, lpad - width - 1:lpad - width] = zcol
    ext_ref[:, lpad - width:lpad] = up.astype(jnp.bfloat16)
    ext_ref[:, lpad:lpad + tm] = x_t.astype(jnp.bfloat16)
    ext_ref[:, lpad + tm:lpad + tm + width] = dn.astype(jnp.bfloat16)
    ext_ref[:, lpad + tm + width:lpad + tm + width + 1] = zcol

    wpos = wpos_ref[...]                             # (1, TM)
    not_left = wpos > 0                              # tap column w-1 exists
    not_right = wpos < width - 1                     # tap column w+1 exists

    acc = jnp.zeros((cout, tm), jnp.float32)
    base = lpad - width - 1
    for dy in range(3):                              # unrolled 3x3 tap loop
        for dx in range(3):
            s = base + dy * width + dx
            tap = ext_ref[:, s:s + tm]               # (Cin, TM) bf16, shifted by (dy-1, dx-1)
            if dx == 0:
                tap = jnp.where(not_left, tap, jnp.zeros_like(tap))
            elif dx == 2:
                tap = jnp.where(not_right, tap, jnp.zeros_like(tap))
            acc = acc + jax.lax.dot_general(
                w_ref[3 * dy + dx], tap,
                dimension_numbers=(((1,), (0,)), ((), ())),
                preferred_element_type=jnp.float32)  # (Cout, TM), f32 MXU accumulation

    acc = acc + b_ref[...]                           # bias, broadcast over lanes
    act = jnp.maximum(acc, 0.0)                      # ReLU (dropout = identity in eval mode)
    res = x_t[:cout, :]                              # exact f32 residual x[:, :Cout]
    out_ref[0] = (act + res).astype(out_ref.dtype)   # lane-dense (Cout, TM) store


def _pick_rows_per_tile(H, W, cin, cout, n_batch, *, budget_bytes=12 << 20, max_lanes=2048):
    """Rows per spatial tile: whole rows, VMEM-bounded, lane-aligned, with grid depth."""
    per_lane = 4 * (6 * cin + 6 * cout)              # rough double-buffered slabs + temporaries
    cap = max(W, min(max_lanes, budget_bytes // per_lane))
    divisors = [d for d in range(1, H + 1) if H % d == 0]
    valid = [d for d in divisors if d * W <= cap] or [1]
    aligned = [d for d in valid if (d * W) % 128 == 0]
    pool = aligned if aligned else valid
    best = max(pool)
    if n_batch * (H // best) < 4:                    # keep grid depth (v7x dual TensorCore)
        deeper = [d for d in pool if H // d >= 2]
        if deeper:
            best = max(deeper)
    return best


def block_forward(x_nchw, weight_oihw, bias, *, kernel_size=(3, 3)):
    """Forward pass of `Block` (act='relu', eval-mode dropout).

    x_nchw      : (N, Cin, H, W)    float32
    weight_oihw : (Cout, Cin, 3, 3) float32   (PyTorch Conv2d layout)
    bias        : (Cout,)           float32
    returns     : (N, Cout, H, W)   float32
    """
    N, Cin, H, W = x_nchw.shape
    Cout = weight_oihw.shape[0]
    assert tuple(kernel_size) == (3, 3), "this kernel implements the 3x3 'same' case"
    assert Cout <= Cin, "residual x[:, :out_channels] requires out_channels <= in_channels"
    HW = H * W

    th = _pick_rows_per_tile(H, W, Cin, Cout, N)     # rows per tile
    tm = th * W                                      # lanes per tile (whole image rows)
    n_tiles = H // th

    # ---- wrapper glue (all cheap; x is NOT copied/inflated) ----
    x_flat = x_nchw.reshape(N, Cin, HW)              # free reshape; x read once by the kernel

    # Halo rows: the single image row directly above / below each tile; zeros at the image
    # border == the conv's zero padding.  Extra HBM traffic ~ 2/th of x.
    zrow = jnp.zeros((N, 1, Cin, W), x_nchw.dtype)
    if n_tiles > 1:
        up_h = jnp.concatenate(
            [zrow, x_nchw[:, :, th - 1:H - 1:th, :].transpose(0, 2, 1, 3)], axis=1)
        dn_h = jnp.concatenate(
            [x_nchw[:, :, th:H:th, :].transpose(0, 2, 1, 3), zrow], axis=1)
    else:
        up_h = zrow
        dn_h = zrow

    wpos = (jnp.arange(tm, dtype=jnp.int32) % W).reshape(1, tm)   # column index per lane

    # Weight/bias repack (tap-major, bf16).  NOTE: O(9*Cin*Cout), negligible; in a real
    # module precompute once at init to keep it off the per-call path entirely.
    w9 = weight_oihw.transpose(2, 3, 0, 1).reshape(9, Cout, Cin).astype(jnp.bfloat16)
    b2d = bias.reshape(Cout, 1).astype(jnp.float32)

    lpad = ((W + 1 + 127) // 128) * 128              # x tile lands 128-aligned in the scratch

    kernel = functools.partial(_block_kernel, cin=Cin, cout=Cout, width=W, tm=tm, lpad=lpad)

    bytes_accessed = ((x_flat.size + up_h.size + dn_h.size + b2d.size + wpos.size) * 4
                      + w9.size * 2 + N * Cout * HW * 4)

    out_flat = pl.pallas_call(
        kernel,
        out_shape=jax.ShapeDtypeStruct((N, Cout, HW), x_nchw.dtype),
        grid_spec=pltpu.PrefetchScalarGridSpec(
            num_scalar_prefetch=0,
            grid=(N, n_tiles),
            in_specs=[
                pl.BlockSpec((1, Cin, tm), lambda n, m: (n, 0, m)),       # x tile
                pl.BlockSpec((1, 1, Cin, W), lambda n, m: (n, m, 0, 0)),  # halo row above
                pl.BlockSpec((1, 1, Cin, W), lambda n, m: (n, m, 0, 0)),  # halo row below
                pl.BlockSpec((1, tm), lambda n, m: (0, 0)),               # column indices
                pl.BlockSpec((9, Cout, Cin), lambda n, m: (0, 0, 0)),     # weights (resident)
                pl.BlockSpec((Cout, 1), lambda n, m: (0, 0)),             # bias (resident)
            ],
            out_specs=pl.BlockSpec((1, Cout, tm), lambda n, m: (n, 0, m)),
            scratch_shapes=[pltpu.VMEM((Cin, lpad + tm + W + 1), jnp.bfloat16)],
        ),
        compiler_params=pltpu.CompilerParams(
            dimension_semantics=("parallel", "parallel"),
            # Tile selection keeps the explicit working set well under every generation's
            # budget (v7x: 64 MiB physical); 48 MiB scoped limit leaves compiler headroom.
            vmem_limit_bytes=48 * 1024 * 1024,
        ),
        cost_estimate=pl.CostEstimate(
            flops=2 * N * HW * 9 * Cin * Cout,
            transcendentals=0,
            bytes_accessed=bytes_accessed),
    )(x_flat, up_h, dn_h, wpos, w9, b2d)

    return out_flat.reshape(N, Cout, H, W)           # NCHW; reshape is free


def _reference(x, w, b, *, matmul_dtype=jnp.float32):
    """Pure-JAX reference (mirrors PyTorch eval-mode forward).

    matmul_dtype=jnp.bfloat16 reproduces the kernel's math: bf16 conv operands,
    f32 accumulation, exact f32 residual add.
    """
    cout = w.shape[0]
    xc = x.astype(matmul_dtype).astype(jnp.float32)
    wc = w.astype(matmul_dtype).astype(jnp.float32)
    conv = jax.lax.conv_general_dilated(
        xc, wc, window_strides=(1, 1), padding="SAME",
        dimension_numbers=("NCHW", "OIHW", "NCHW"))
    conv = conv + b[None, :, None, None]
    act = jnp.maximum(conv, 0.0)
    return act + x[:, :cout]


if __name__ == "__main__":
    key = jax.random.PRNGKey(0)
    k_x, k_w, k_b = jax.random.split(key, 3)

    N, Cin, Cout, H, W = 2, 6, 4, 16, 16
    x = jax.random.normal(k_x, (N, Cin, H, W), dtype=jnp.float32)
    weight = 0.1 * jax.random.normal(k_w, (Cout, Cin, 3, 3), dtype=jnp.float32)
    bias = 0.1 * jax.random.normal(k_b, (Cout,), dtype=jnp.float32)

    fwd = jax.jit(block_forward)
    out = jax.block_until_ready(fwd(x, weight, bias))
    assert out.shape == (N, Cout, H, W)

    # Strict check: same math as the kernel (bf16 conv operands, f32 accum, f32 residual).
    ref_matched = _reference(x, weight, bias, matmul_dtype=jnp.bfloat16)
    assert jnp.allclose(out, ref_matched, atol=2e-3, rtol=2e-3), "mismatch vs bf16-matched reference"

    # Loose check: full-precision PyTorch-equivalent forward (bf16 matmul tolerance).
    ref_f32 = _reference(x, weight, bias)
    assert jnp.allclose(out, ref_f32, atol=7.5e-2, rtol=7.5e-2), "mismatch vs f32 reference"

    print("KERNEL_OK")
</pallas_src>

<mosaic_0001>
module attributes {stable_mosaic.version = 11 : i64} {
  func.func @_block_kernel(%arg0: i32, %arg1: i32, %arg2: memref<1x6x128xf32, #tpu.memory_space<vmem>>, %arg3: memref<1x1x6x16xf32, #tpu.memory_space<vmem>>, %arg4: memref<1x1x6x16xf32, #tpu.memory_space<vmem>>, %arg5: memref<1x128xi32, #tpu.memory_space<vmem>>, %arg6: memref<9x4x6xbf16, #tpu.memory_space<vmem>>, %arg7: memref<4x1xf32, #tpu.memory_space<vmem>>, %arg8: memref<1x4x128xf32, #tpu.memory_space<vmem>>, %arg9: memref<6x273xbf16, #tpu.memory_space<vmem>>) attributes {dimension_semantics = [#tpu.dimension_semantics<parallel>, #tpu.dimension_semantics<parallel>], iteration_bounds = array<i64: 2, 2>, scalar_prefetch = 0 : i64, scratch_operands = 1 : i64, tpu.core_type = #tpu.core_type<tc>, window_params = [{transform_indices = @transform_0, window_bounds = array<i64: 1, 6, 128>}, {transform_indices = @transform_1, window_bounds = array<i64: 1, 1, 6, 16>}, {transform_indices = @transform_2, window_bounds = array<i64: 1, 1, 6, 16>}, {pipeline_mode = #tpu.pipeline_mode<synchronous>, transform_indices = @transform_3, window_bounds = array<i64: 1, 128>}, {pipeline_mode = #tpu.pipeline_mode<synchronous>, transform_indices = @transform_4, window_bounds = array<i64: 9, 4, 6>}, {pipeline_mode = #tpu.pipeline_mode<synchronous>, transform_indices = @transform_5, window_bounds = array<i64: 4, 1>}, {transform_indices = @transform_6, window_bounds = array<i64: 1, 4, 128>}]} {
    %c0 = arith.constant 0 : index
    %c0_0 = arith.constant 0 : index
    %c0_1 = arith.constant 0 : index
    %0 = vector.load %arg2[%c0, %c0_0, %c0_1] : memref<1x6x128xf32, #tpu.memory_space<vmem>>, vector<1x6x128xf32>
    %1 = vector.shape_cast %0 : vector<1x6x128xf32> to vector<6x128xf32>
    %c0_2 = arith.constant 0 : index
    %c0_3 = arith.constant 0 : index
    %c0_4 = arith.constant 0 : index
    %c0_5 = arith.constant 0 : index
    %2 = vector.load %arg3[%c0_2, %c0_3, %c0_4, %c0_5] : memref<1x1x6x16xf32, #tpu.memory_space<vmem>>, vector<1x1x6x16xf32>
    %3 = vector.shape_cast %2 : vector<1x1x6x16xf32> to vector<6x16xf32>
    %c0_6 = arith.constant 0 : index
    %c0_7 = arith.constant 0 : index
    %c0_8 = arith.constant 0 : index
    %c0_9 = arith.constant 0 : index
    %4 = vector.load %arg4[%c0_6, %c0_7, %c0_8, %c0_9] : memref<1x1x6x16xf32, #tpu.memory_space<vmem>>, vector<1x1x6x16xf32>
    %5 = vector.shape_cast %4 : vector<1x1x6x16xf32> to vector<6x16xf32>
    %cst = arith.constant 0.000000e+00 : bf16
    %6 = vector.broadcast %cst : bf16 to vector<6x1xbf16>
    %c0_10 = arith.constant 0 : index
    %c111 = arith.constant 111 : index
    %7 = vector.load %arg9[%c0_10, %c111] : memref<6x273xbf16, #tpu.memory_space<vmem>>, vector<6x1xbf16>
    tpu.vector_store %arg9[%c0_10, %c111], %6 {strides = array<i32>} : memref<6x273xbf16, #tpu.memory_space<vmem>>, vector<6x1xbf16>,
    %8 = arith.truncf %3 : vector<6x16xf32> to vector<6x16xbf16>
    %c0_11 = arith.constant 0 : index
    %c112 = arith.constant 112 : index
    %9 = vector.load %arg9[%c0_11, %c112] : memref<6x273xbf16, #tpu.memory_space<vmem>>, vector<6x16xbf16>
    tpu.vector_store %arg9[%c0_11, %c112], %8 {strides = array<i32>} : memref<6x273xbf16, #tpu.memory_space<vmem>>, vector<6x16xbf16>,
    %10 = arith.truncf %1 : vector<6x128xf32> to vector<6x128xbf16>
    %c0_12 = arith.constant 0 : index
    %c128 = arith.constant 128 : index
    %11 = vector.load %arg9[%c0_12, %c128] : memref<6x273xbf16, #tpu.memory_space<vmem>>, vector<6x128xbf16>
    tpu.vector_store %arg9[%c0_12, %c128], %10 {strides = array<i32>} : memref<6x273xbf16, #tpu.memory_space<vmem>>, vector<6x128xbf16>,
    %12 = arith.truncf %5 : vector<6x16xf32> to vector<6x16xbf16>
    %c0_13 = arith.constant 0 : index
    %c256 = arith.constant 256 : index
    %13 = vector.load %arg9[%c0_13, %c256] : memref<6x273xbf16, #tpu.memory_space<vmem>>, vector<6x16xbf16>
    tpu.vector_store %arg9[%c0_13, %c256], %12 {strides = array<i32>} : memref<6x273xbf16, #tpu.memory_space<vmem>>, vector<6x16xbf16>,
    %c0_14 = arith.constant 0 : index
    %c272 = arith.constant 272 : index
    %14 = vector.load %arg9[%c0_14, %c272] : memref<6x273xbf16, #tpu.memory_space<vmem>>, vector<6x1xbf16>
    tpu.vector_store %arg9[%c0_14, %c272], %6 {strides = array<i32>} : memref<6x273xbf16, #tpu.memory_space<vmem>>, vector<6x1xbf16>,
    %c0_15 = arith.constant 0 : index
    %c0_16 = arith.constant 0 : index
    %15 = vector.load %arg5[%c0_15, %c0_16] : memref<1x128xi32, #tpu.memory_space<vmem>>, vector<1x128xi32>
    %c0_i32 = arith.constant 0 : i32
    %16 = vector.broadcast %c0_i32 : i32 to vector<1x128xi32>
    %17 = arith.cmpi sgt, %15, %16 : vector<1x128xi32>
    %c15_i32 = arith.constant 15 : i32
    %18 = vector.broadcast %c15_i32 : i32 to vector<1x128xi32>
    %19 = arith.cmpi slt, %15, %18 : vector<1x128xi32>
    %cst_17 = arith.constant 0.000000e+00 : f32
    %20 = vector.broadcast %cst_17 : f32 to vector<4x128xf32>
    %c0_18 = arith.constant 0 : index
    %c111_19 = arith.constant 111 : index
    %21 = vector.load %arg9[%c0_18, %c111_19] : memref<6x273xbf16, #tpu.memory_space<vmem>>, vector<6x128xbf16>
    %cst_20 = arith.constant 0.000000e+00 : bf16
    %22 = vector.broadcast %cst_20 : bf16 to vector<6x128xbf16>
    %23 = vector.shape_cast %17 : vector<1x128xi1> to vector<1x128xi1>
    %24 = vector.broadcast %23 : vector<1x128xi1> to vector<6x128xi1>
    %25 = arith.select %24, %21, %22 : vector<6x128xi1>, vector<6x128xbf16>
    %c0_21 = arith.constant 0 : index
    %c0_22 = arith.constant 0 : index
    %c0_23 = arith.constant 0 : index
    %26 = vector.load %arg6[%c0_21, %c0_22, %c0_23] : memref<9x4x6xbf16, #tpu.memory_space<vmem>>, vector<1x4x6xbf16>
    %27 = vector.shape_cast %26 : vector<1x4x6xbf16> to vector<4x6xbf16>
    %cst_24 = arith.constant dense<0.000000e+00> : vector<4x128xf32>
    %28 = tpu.matmul %27, %25, %cst_24 {dimension_numbers = #tpu.dot_dimension_numbers<[1], [0], [0], [1], [0, 0, 1, 1], [], []>} : vector<4x6xbf16>, vector<6x128xbf16>, vector<4x128xf32> -> vector<4x128xf32>
    %29 = arith.addf %20, %28 : vector<4x128xf32>
    %c0_25 = arith.constant 0 : index
    %c112_26 = arith.constant 112 : index
    %30 = vector.load %arg9[%c0_25, %c112_26] : memref<6x273xbf16, #tpu.memory_space<vmem>>, vector<6x128xbf16>
    %c1 = arith.constant 1 : index
    %c0_27 = arith.constant 0 : index
    %c0_28 = arith.constant 0 : index
    %31 = vector.load %arg6[%c1, %c0_27, %c0_28] : memref<9x4x6xbf16, #tpu.memory_space<vmem>>, vector<1x4x6xbf16>
    %32 = vector.shape_cast %31 : vector<1x4x6xbf16> to vector<4x6xbf16>
    %cst_29 = arith.constant dense<0.000000e+00> : vector<4x128xf32>
    %33 = tpu.matmul %32, %30, %cst_29 {dimension_numbers = #tpu.dot_dimension_numbers<[1], [0], [0], [1], [0, 0, 1, 1], [], []>} : vector<4x6xbf16>, vector<6x128xbf16>, vector<4x128xf32> -> vector<4x128xf32>
    %34 = arith.addf %29, %33 : vector<4x128xf32>
    %c0_30 = arith.constant 0 : index
    %c113 = arith.constant 113 : index
    %35 = vector.load %arg9[%c0_30, %c113] : memref<6x273xbf16, #tpu.memory_space<vmem>>, vector<6x128xbf16>
    %cst_31 = arith.constant 0.000000e+00 : bf16
    %36 = vector.broadcast %cst_31 : bf16 to vector<6x128xbf16>
    %37 = vector.shape_cast %19 : vector<1x128xi1> to vector<1x128xi1>
    %38 = vector.broadcast %37 : vector<1x128xi1> to vector<6x128xi1>
    %39 = arith.select %38, %35, %36 : vector<6x128xi1>, vector<6x128xbf16>
    %c2 = arith.constant 2 : index
    %c0_32 = arith.constant 0 : index
    %c0_33 = arith.constant 0 : index
    %40 = vector.load %arg6[%c2, %c0_32, %c0_33] : memref<9x4x6xbf16, #tpu.memory_space<vmem>>, vector<1x4x6xbf16>
    %41 = vector.shape_cast %40 : vector<1x4x6xbf16> to vector<4x6xbf16>
    %cst_34 = arith.constant dense<0.000000e+00> : vector<4x128xf32>
    %42 = tpu.matmul %41, %39, %cst_34 {dimension_numbers = #tpu.dot_dimension_numbers<[1], [0], [0], [1], [0, 0, 1, 1], [], []>} : vector<4x6xbf16>, vector<6x128xbf16>, vector<4x128xf32> -> vector<4x128xf32>
    %43 = arith.addf %34, %42 : vector<4x128xf32>
    %c0_35 = arith.constant 0 : index
    %c127 = arith.constant 127 : index
    %44 = vector.load %arg9[%c0_35, %c127] : memref<6x273xbf16, #tpu.memory_space<vmem>>, vector<6x128xbf16>
    %cst_36 = arith.constant 0.000000e+00 : bf16
    %45 = vector.broadcast %cst_36 : bf16 to vector<6x128xbf16>
    %46 = vector.shape_cast %17 : vector<1x128xi1> to vector<1x128xi1>
    %47 = vector.broadcast %46 : vector<1x128xi1> to vector<6x128xi1>
    %48 = arith.select %47, %44, %45 : vector<6x128xi1>, vector<6x128xbf16>
    %c3 = arith.constant 3 : index
    %c0_37 = arith.constant 0 : index
    %c0_38 = arith.constant 0 : index
    %49 = vector.load %arg6[%c3, %c0_37, %c0_38] : memref<9x4x6xbf16, #tpu.memory_space<vmem>>, vector<1x4x6xbf16>
    %50 = vector.shape_cast %49 : vector<1x4x6xbf16> to vector<4x6xbf16>
    %cst_39 = arith.constant dense<0.000000e+00> : vector<4x128xf32>
    %51 = tpu.matmul %50, %48, %cst_39 {dimension_numbers = #tpu.dot_dimension_numbers<[1], [0], [0], [1], [0, 0, 1, 1], [], []>} : vector<4x6xbf16>, vector<6x128xbf16>, vector<4x128xf32> -> vector<4x128xf32>
    %52 = arith.addf %43, %51 : vector<4x128xf32>
    %c0_40 = arith.constant 0 : index
    %c128_41 = arith.constant 128 : index
    %53 = vector.load %arg9[%c0_40, %c128_41] : memref<6x273xbf16, #tpu.memory_space<vmem>>, vector<6x128xbf16>
    %c4 = arith.constant 4 : index
    %c0_42 = arith.constant 0 : index
    %c0_43 = arith.constant 0 : index
    %54 = vector.load %arg6[%c4, %c0_42, %c0_43] : memref<9x4x6xbf16, #tpu.memory_space<vmem>>, vector<1x4x6xbf16>
    %55 = vector.shape_cast %54 : vector<1x4x6xbf16> to vector<4x6xbf16>
    %cst_44 = arith.constant dense<0.000000e+00> : vector<4x128xf32>
    %56 = tpu.matmul %55, %53, %cst_44 {dimension_numbers = #tpu.dot_dimension_numbers<[1], [0], [0], [1], [0, 0, 1, 1], [], []>} : vector<4x6xbf16>, vector<6x128xbf16>, vector<4x128xf32> -> vector<4x128xf32>
    %57 = arith.addf %52, %56 : vector<4x128xf32>
    %c0_45 = arith.constant 0 : index
    %c129 = arith.constant 129 : index
    %58 = vector.load %arg9[%c0_45, %c129] : memref<6x273xbf16, #tpu.memory_space<vmem>>, vector<6x128xbf16>
    %cst_46 = arith.constant 0.000000e+00 : bf16
    %59 = vector.broadcast %cst_46 : bf16 to vector<6x128xbf16>
    %60 = vector.shape_cast %19 : vector<1x128xi1> to vector<1x128xi1>
    %61 = vector.broadcast %60 : vector<1x128xi1> to vector<6x128xi1>
    %62 = arith.select %61, %58, %59 : vector<6x128xi1>, vector<6x128xbf16>
    %c5 = arith.constant 5 : index
    %c0_47 = arith.constant 0 : index
    %c0_48 = arith.constant 0 : index
    %63 = vector.load %arg6[%c5, %c0_47, %c0_48] : memref<9x4x6xbf16, #tpu.memory_space<vmem>>, vector<1x4x6xbf16>
    %64 = vector.shape_cast %63 : vector<1x4x6xbf16> to vector<4x6xbf16>
    %cst_49 = arith.constant dense<0.000000e+00> : vector<4x128xf32>
    %65 = tpu.matmul %64, %62, %cst_49 {dimension_numbers = #tpu.dot_dimension_numbers<[1], [0], [0], [1], [0, 0, 1, 1], [], []>} : vector<4x6xbf16>, vector<6x128xbf16>, vector<4x128xf32> -> vector<4x128xf32>
    %66 = arith.addf %57, %65 : vector<4x128xf32>
    %c0_50 = arith.constant 0 : index
    %c143 = arith.constant 143 : index
    %67 = vector.load %arg9[%c0_50, %c143] : memref<6x273xbf16, #tpu.memory_space<vmem>>, vector<6x128xbf16>
    %cst_51 = arith.constant 0.000000e+00 : bf16
    %68 = vector.broadcast %cst_51 : bf16 to vector<6x128xbf16>
    %69 = vector.shape_cast %17 : vector<1x128xi1> to vector<1x128xi1>
    %70 = vector.broadcast %69 : vector<1x128xi1> to vector<6x128xi1>
    %71 = arith.select %70, %67, %68 : vector<6x128xi1>, vector<6x128xbf16>
    %c6 = arith.constant 6 : index
    %c0_52 = arith.constant 0 : index
    %c0_53 = arith.constant 0 : index
    %72 = vector.load %arg6[%c6, %c0_52, %c0_53] : memref<9x4x6xbf16, #tpu.memory_space<vmem>>, vector<1x4x6xbf16>
    %73 = vector.shape_cast %72 : vector<1x4x6xbf16> to vector<4x6xbf16>
    %cst_54 = arith.constant dense<0.000000e+00> : vector<4x128xf32>
    %74 = tpu.matmul %73, %71, %cst_54 {dimension_numbers = #tpu.dot_dimension_numbers<[1], [0], [0], [1], [0, 0, 1, 1], [], []>} : vector<4x6xbf16>, vector<6x128xbf16>, vector<4x128xf32> -> vector<4x128xf32>
    %75 = arith.addf %66, %74 : vector<4x128xf32>
    %c0_55 = arith.constant 0 : index
    %c144 = arith.constant 144 : index
    %76 = vector.load %arg9[%c0_55, %c144] : memref<6x273xbf16, #tpu.memory_space<vmem>>, vector<6x128xbf16>
    %c7 = arith.constant 7 : index
    %c0_56 = arith.constant 0 : index
    %c0_57 = arith.constant 0 : index
    %77 = vector.load %arg6[%c7, %c0_56, %c0_57] : memref<9x4x6xbf16, #tpu.memory_space<vmem>>, vector<1x4x6xbf16>
    %78 = vector.shape_cast %77 : vector<1x4x6xbf16> to vector<4x6xbf16>
    %cst_58 = arith.constant dense<0.000000e+00> : vector<4x128xf32>
    %79 = tpu.matmul %78, %76, %cst_58 {dimension_numbers = #tpu.dot_dimension_numbers<[1], [0], [0], [1], [0, 0, 1, 1], [], []>} : vector<4x6xbf16>, vector<6x128xbf16>, vector<4x128xf32> -> vector<4x128xf32>
    %80 = arith.addf %75, %79 : vector<4x128xf32>
    %c0_59 = arith.constant 0 : index
    %c145 = arith.constant 145 : index
    %81 = vector.load %arg9[%c0_59, %c145] : memref<6x273xbf16, #tpu.memory_space<vmem>>, vector<6x128xbf16>
    %cst_60 = arith.constant 0.000000e+00 : bf16
    %82 = vector.broadcast %cst_60 : bf16 to vector<6x128xbf16>
    %83 = vector.shape_cast %19 : vector<1x128xi1> to vector<1x128xi1>
    %84 = vector.broadcast %83 : vector<1x128xi1> to vector<6x128xi1>
    %85 = arith.select %84, %81, %82 : vector<6x128xi1>, vector<6x128xbf16>
    %c8 = arith.constant 8 : index
    %c0_61 = arith.constant 0 : index
    %c0_62 = arith.constant 0 : index
    %86 = vector.load %arg6[%c8, %c0_61, %c0_62] : memref<9x4x6xbf16, #tpu.memory_space<vmem>>, vector<1x4x6xbf16>
    %87 = vector.shape_cast %86 : vector<1x4x6xbf16> to vector<4x6xbf16>
    %cst_63 = arith.constant dense<0.000000e+00> : vector<4x128xf32>
    %88 = tpu.matmul %87, %85, %cst_63 {dimension_numbers = #tpu.dot_dimension_numbers<[1], [0], [0], [1], [0, 0, 1, 1], [], []>} : vector<4x6xbf16>, vector<6x128xbf16>, vector<4x128xf32> -> vector<4x128xf32>
    %89 = arith.addf %80, %88 : vector<4x128xf32>
    %c0_64 = arith.constant 0 : index
    %c0_65 = arith.constant 0 : index
    %90 = vector.load %arg7[%c0_64, %c0_65] : memref<4x1xf32, #tpu.memory_space<vmem>>, vector<4x1xf32>
    %91 = vector.broadcast %90 : vector<4x1xf32> to vector<4x128xf32>
    %92 = arith.addf %89, %91 : vector<4x128xf32>
    %cst_66 = arith.constant 0.000000e+00 : f32
    %93 = vector.broadcast %cst_66 : f32 to vector<4x128xf32>
    %94 = arith.maximumf %92, %93 : vector<4x128xf32>
    %95 = vector.extract_strided_slice %1 {offsets = [0, 0], sizes = [4, 128], strides = [1, 1]} : vector<6x128xf32> to vector<4x128xf32>
    %96 = arith.addf %94, %95 : vector<4x128xf32>
    %c0_67 = arith.constant 0 : index
    %c0_68 = arith.constant 0 : index
    %c0_69 = arith.constant 0 : index
    %97 = vector.load %arg8[%c0_67, %c0_68, %c0_69] : memref<1x4x128xf32, #tpu.memory_space<vmem>>, vector<1x4x128xf32>
    %98 = vector.shape_cast %97 : vector<1x4x128xf32> to vector<4x128xf32>
    %99 = vector.shape_cast %96 : vector<4x128xf32> to vector<1x4x128xf32>
    tpu.vector_store %arg8[%c0_67, %c0_68, %c0_69], %99 {strides = array<i32>} : memref<1x4x128xf32, #tpu.memory_space<vmem>>, vector<1x4x128xf32>,
    return
  }
  func.func @transform_0(%arg0: i32, %arg1: i32) -> (i32, i32, i32) {
    %c0_i32 = arith.constant 0 : i32
    %c0_i32_0 = arith.constant 0 : i32
    return %arg0, %c0_i32, %arg1 : i32, i32, i32
  }
  func.func @transform_1(%arg0: i32, %arg1: i32) -> (i32, i32, i32, i32) {
    %c0_i32 = arith.constant 0 : i32
    %c0_i32_0 = arith.constant 0 : i32
    %c0_i32_1 = arith.constant 0 : i32
    return %arg0, %arg1, %c0_i32, %c0_i32_0 : i32, i32, i32, i32
  }
  func.func @transform_2(%arg0: i32, %arg1: i32) -> (i32, i32, i32, i32) {
    %c0_i32 = arith.constant 0 : i32
    %c0_i32_0 = arith.constant 0 : i32
    %c0_i32_1 = arith.constant 0 : i32
    return %arg0, %arg1, %c0_i32, %c0_i32_0 : i32, i32, i32, i32
  }
  func.func @transform_3(%arg0: i32, %arg1: i32) -> (i32, i32) {
    %c0_i32 = arith.constant 0 : i32
    %c0_i32_0 = arith.constant 0 : i32
    %c0_i32_1 = arith.constant 0 : i32
    return %c0_i32, %c0_i32_0 : i32, i32
  }
  func.func @transform_4(%arg0: i32, %arg1: i32) -> (i32, i32, i32) {
    %c0_i32 = arith.constant 0 : i32
    %c0_i32_0 = arith.constant 0 : i32
    %c0_i32_1 = arith.constant 0 : i32
    %c0_i32_2 = arith.constant 0 : i32
    return %c0_i32, %c0_i32_0, %c0_i32_1 : i32, i32, i32
  }
  func.func @transform_5(%arg0: i32, %arg1: i32) -> (i32, i32) {
    %c0_i32 = arith.constant 0 : i32
    %c0_i32_0 = arith.constant 0 : i32
    %c0_i32_1 = arith.constant 0 : i32
    return %c0_i32, %c0_i32_0 : i32, i32
  }
  func.func @transform_6(%arg0: i32, %arg1: i32) -> (i32, i32, i32) {
    %c0_i32 = arith.constant 0 : i32
    %c0_i32_0 = arith.constant 0 : i32
    return %arg0, %c0_i32, %arg1 : i32, i32, i32
  }
}

</mosaic_0001>

<llo_original>
// kernel: block_forward.1
$region0: #{block_forward.1}
  #allocation0 [shape = 'u32[]', space=smem, size = 0x4, offset = 0x4, fixed_abs, tag = 'smem constant byte address 0x4 - core index']
  #allocation1 [shape = 'u32[144,128]{1,0:T(1,128)}', space=vmem, size = 0x12000, scoped, tag = 'internal scratch']
  #allocation2 [shape = 'bf16[6,273]{1,0:T(8,128)(2,1)}', space=vmem, size = 0x1800, scoped, tag = 'scratch operand']
  %s0 = inlined_call_operand.vmem [shape: f32[2,6,256], index: 0, kind: input, shape index: {}]
  %s1 = inlined_call_operand.vmem [shape: f32[2,2,6,16], index: 1, kind: input, shape index: {}]
  %s2 = inlined_call_operand.vmem [shape: f32[2,2,6,16], index: 2, kind: input, shape index: {}]
  %s3 = inlined_call_operand.vmem [shape: s32[1,128], index: 3, kind: input, shape index: {}]
  %s4 = inlined_call_operand.vmem [shape: bf16[9,4,6], index: 4, kind: input, shape index: {}]
  %s5 = inlined_call_operand.vmem [shape: f32[4,1], index: 5, kind: input, shape index: {}]
  %s6 = inlined_call_operand.vmem [shape: f32[2,4,256], index: 6, kind: output, shape index: {}]
  %s7 = sld [smem:[#allocation0]]
  $region57: #{block_forward.1} parent=0
    _
  %s9 = ssub.s32 1, %s7
  %s10 = scalar_select 0, %s9, %s7
  loop: start=0, step=1, limit=6
  $region2: #{block_forward.1} parent=0 // loop_pre_header
    _
  $region3: #{block_forward.1} parent=0 // loop_header
    %s12 = sphi 0, %s16
    %p13 = scmp.ge.s32.totalorder %s12, 6
    %s19 = sphi 0, %s31
    %s20 = sphi 0, %s27
    %s21 = sphi 0, %s19
    %s22 = sphi 0, %s20
    %s23 = sphi 0, %s21
    %s24 = sphi 0, %s22
    %s36 = sphi 0, %s38
    %s39 = sphi 0, %s36
    %s40 = sphi 0, %s39
    %s56 = sphi 0, %s40
    %s64 = sphi 0, %s66
    %s67 = sphi 0, %s64
    %s68 = sphi 0, %s67
    %s84 = sphi 0, %s68
    %s92 = sphi 0, %s94
    %s95 = sphi 0, %s92
    %s96 = sphi 0, %s95
    %s112 = sphi 0, %s96
    %s116 = sphi 0, %s116
    %s118 = sphi 0, %s116
    %s119 = sphi 0, %s118
    %s133 = sphi 0, %s119
    %s137 = sphi 0, %s137
    %s139 = sphi 0, %s137
    %s140 = sphi 0, %s139
    %s154 = sphi 0, %s140
    %s158 = sphi 0, %s158
    %s160 = sphi 0, %s158
    %s161 = sphi 0, %s160
    %s175 = sphi 0, %s161
    %s183 = sphi 0, %s185
    %s186 = sphi 0, %s183
    %s187 = sphi 0, %s186
    %s203 = sphi 0, %s187
  $region4: #{block_forward.1} parent=0 // loop_header_branch
    %15 = sbr.rel (%p13) target = $region8
  $region5: #{block_forward.1} parent=0 // loop_body
    %s17 = ssub.s32 %s12, 1
    %s18 = ssub.s32 %s12, 2
    %s25 = sadd.s32 1, %s20
    %p26 = scmp.ge.s32.totalorder %s25, 2
    %s27 = scalar_select %p26, 0, %s25
    %s28 = sadd.s32 1, %s19
    %s29 = scalar_select %p26, %s28, %s19
    %p30 = scmp.ge.s32.totalorder %s29, 2
    %s31 = scalar_select %p30, 0, %s29
    %s32 = ssub.s32 %s19, %s31
    %s33 = ssub.s32 %s20, %s27
    %s34 = sor.u32 %s32, %s33
    %p35 = scmp.eq.s32.totalorder %s34, 0
    %s37 = sadd.s32 %s36, 1
    %s38 = scalar_select %p35, %s36, %s37
    %p41 = pneg %p35
    %p42 = scmp.eq.s32.totalorder %s12, 3
    %p43 = por %p41, %p42
    %p44 = scmp.ne.s32.totalorder %s36, %s39
    %p45 = scmp.eq.s32.totalorder %s12, 0
    %p46 = por %p44, %p45
    %p47 = scmp.ne.s32.totalorder %s36, %s39
    %p48 = scmp.eq.s32.totalorder %s17, 3
    %p49 = por %p47, %p48
    %p50 = scmp.ne.s32.totalorder %s39, %s40
    %p51 = scmp.eq.s32.totalorder %s17, 0
    %p52 = por %p50, %p51
    %p53 = scmp.ne.s32.totalorder %s39, %s40
    %p54 = scmp.eq.s32.totalorder %s18, 3
    %p55 = por %p53, %p54
    %p57 = scmp.ne.s32.totalorder %s40, %s56
    %p58 = scmp.eq.s32.totalorder %s18, 0
    %p59 = por %p57, %p58
    %s60 = ssub.s32 %s19, %s31
    %s61 = ssub.s32 %s20, %s27
    %s62 = sor.u32 %s60, %s61
    %p63 = scmp.eq.s32.totalorder %s62, 0
    %s65 = sadd.s32 %s64, 1
    %s66 = scalar_select %p63, %s64, %s65
    %p69 = pneg %p63
    %p70 = scmp.eq.s32.totalorder %s12, 3
    %p71 = por %p69, %p70
    %p72 = scmp.ne.s32.totalorder %s64, %s67
    %p73 = scmp.eq.s32.totalorder %s12, 0
    %p74 = por %p72, %p73
    %p75 = scmp.ne.s32.totalorder %s64, %s67
    %p76 = scmp.eq.s32.totalorder %s17, 3
    %p77 = por %p75, %p76
    %p78 = scmp.ne.s32.totalorder %s67, %s68
    %p79 = scmp.eq.s32.totalorder %s17, 0
    %p80 = por %p78, %p79
    %p81 = scmp.ne.s32.totalorder %s67, %s68
    %p82 = scmp.eq.s32.totalorder %s18, 3
    %p83 = por %p81, %p82
    %p85 = scmp.ne.s32.totalorder %s68, %s84
    %p86 = scmp.eq.s32.totalorder %s18, 0
    %p87 = por %p85, %p86
    %s88 = ssub.s32 %s19, %s31
    %s89 = ssub.s32 %s20, %s27
    %s90 = sor.u32 %s88, %s89
    %p91 = scmp.eq.s32.totalorder %s90, 0
    %s93 = sadd.s32 %s92, 1
    %s94 = scalar_select %p91, %s92, %s93
    %p97 = pneg %p91
    %p98 = scmp.eq.s32.totalorder %s12, 3
    %p99 = por %p97, %p98
    %p100 = scmp.ne.s32.totalorder %s92, %s95
    %p101 = scmp.eq.s32.totalorder %s12, 0
    %p102 = por %p100, %p101
    %p103 = scmp.ne.s32.totalorder %s92, %s95
    %p104 = scmp.eq.s32.totalorder %s17, 3
    %p105 = por %p103, %p104
    %p106 = scmp.ne.s32.totalorder %s95, %s96
    %p107 = scmp.eq.s32.totalorder %s17, 0
    %p108 = por %p106, %p107
    %p109 = scmp.ne.s32.totalorder %s95, %s96
    %p110 = scmp.eq.s32.totalorder %s18, 3
    %p111 = por %p109, %p110
    %p113 = scmp.ne.s32.totalorder %s96, %s112
    %p114 = scmp.eq.s32.totalorder %s18, 0
    %p115 = por %p113, %p114
    %s117 = sadd.s32 %s116, 1
    %p120 = scmp.eq.s32.totalorder %s12, 3
    %p121 = scmp.ne.s32.totalorder %s116, %s118
    %p122 = scmp.eq.s32.totalorder %s12, 0
    %p123 = por %p121, %p122
    %p124 = scmp.ne.s32.totalorder %s116, %s118
    %p125 = scmp.eq.s32.totalorder %s17, 3
    %p126 = por %p124, %p125
    %p127 = scmp.ne.s32.totalorder %s118, %s119
    %p128 = scmp.eq.s32.totalorder %s17, 0
    %p129 = por %p127, %p128
    %p130 = scmp.ne.s32.totalorder %s118, %s119
    %p131 = scmp.eq.s32.totalorder %s18, 3
    %p132 = por %p130, %p131
    %p134 = scmp.ne.s32.totalorder %s119, %s133
    %p135 = scmp.eq.s32.totalorder %s18, 0
    %p136 = por %p134, %p135
    %s138 = sadd.s32 %s137, 1
    %p141 = scmp.eq.s32.totalorder %s12, 3
    %p142 = scmp.ne.s32.totalorder %s137, %s139
    %p143 = scmp.eq.s32.totalorder %s12, 0
    %p144 = por %p142, %p143
    %p145 = scmp.ne.s32.totalorder %s137, %s139
    %p146 = scmp.eq.s32.totalorder %s17, 3
    %p147 = por %p145, %p146
    %p148 = scmp.ne.s32.totalorder %s139, %s140
    %p149 = scmp.eq.s32.totalorder %s17, 0
    %p150 = por %p148, %p149
    %p151 = scmp.ne.s32.totalorder %s139, %s140
    %p152 = scmp.eq.s32.totalorder %s18, 3
    %p153 = por %p151, %p152
    %p155 = scmp.ne.s32.totalorder %s140, %s154
    %p156 = scmp.eq.s32.totalorder %s18, 0
    %p157 = por %p155, %p156
    %s159 = sadd.s32 %s158, 1
    %p162 = scmp.eq.s32.totalorder %s12, 3
    %p163 = scmp.ne.s32.totalorder %s158, %s160
    %p164 = scmp.eq.s32.totalorder %s12, 0
    %p165 = por %p163, %p164
    %p166 = scmp.ne.s32.totalorder %s158, %s160
    %p167 = scmp.eq.s32.totalorder %s17, 3
    %p168 = por %p166, %p167
    %p169 = scmp.ne.s32.totalorder %s160, %s161
    %p170 = scmp.eq.s32.totalorder %s17, 0
    %p171 = por %p169, %p170
    %p172 = scmp.ne.s32.totalorder %s160, %s161
    %p173 = scmp.eq.s32.totalorder %s18, 3
    %p174 = por %p172, %p173
    %p176 = scmp.ne.s32.totalorder %s161, %s175
    %p177 = scmp.eq.s32.totalorder %s18, 0
    %p178 = por %p176, %p177
    %s179 = ssub.s32 %s19, %s31
    %s180 = ssub.s32 %s20, %s27
    %s181 = sor.u32 %s179, %s180
    %p182 = scmp.eq.s32.totalorder %s181, 0
    %s184 = sadd.s32 %s183, 1
    %s185 = scalar_select %p182, %s183, %s184
    %p188 = pneg %p182
    %p189 = scmp.eq.s32.totalorder %s12, 3
    %p190 = por %p188, %p189
    %p191 = scmp.ne.s32.totalorder %s183, %s186
    %p192 = scmp.eq.s32.totalorder %s12, 0
    %p193 = por %p191, %p192
    %p194 = scmp.ne.s32.totalorder %s183, %s186
    %p195 = scmp.eq.s32.totalorder %s17, 3
    %p196 = por %p194, %p195
    %p197 = scmp.ne.s32.totalorder %s186, %s187
    %p198 = scmp.eq.s32.totalorder %s17, 0
    %p199 = por %p197, %p198
    %p200 = scmp.ne.s32.totalorder %s186, %s187
    %p201 = scmp.eq.s32.totalorder %s18, 3
    %p202 = por %p200, %p201
    %p204 = scmp.ne.s32.totalorder %s187, %s203
    %p205 = scmp.eq.s32.totalorder %s18, 0
    %p206 = por %p204, %p205
    %p207 = scmp.le.s32.totalorder 1, %s12
    %p208 = scmp.lt.s32.totalorder %s12, 5
    %p209 = pnand %p207, %p208
    %p210 = pneg %p209
    // Predicated region
    $region9: #{block_forward.1} parent=5 // pred_check
      _
    $region10: #{block_forward.1} parent=5 // pred_check_branch
      %212 = sbr.rel (%p209) target = $region12
    $region11: #{block_forward.1} parent=5 // pred_region
      %s213 = ssub.s32 %s12, 1
      // Predicated region
      $region13: #{block_forward.1} parent=11 // pred_check
        %p214 = pneg %p129
      $region14: #{block_forward.1} parent=11 // pred_check_branch
        %216 = sbr.rel (%p214) target = $region16
      $region15: #{block_forward.1} parent=11 // pred_region
        _
      $region16: #{block_forward.1} parent=11 // pred_fallthru
        _
      // Predicated region
      $region17: #{block_forward.1} parent=11 // pred_check
        %p217 = pneg %p150
      $region18: #{block_forward.1} parent=11 // pred_check_branch
        %219 = sbr.rel (%p217) target = $region20
      $region19: #{block_forward.1} parent=11 // pred_region
        _
      $region20: #{block_forward.1} parent=11 // pred_fallthru
        _
      // Predicated region
      $region21: #{block_forward.1} parent=11 // pred_check
        %p220 = pneg %p171
      $region22: #{block_forward.1} parent=11 // pred_check_branch
        %222 = sbr.rel (%p220) target = $region24
      $region23: #{block_forward.1} parent=11 // pred_region
        _
      $region24: #{block_forward.1} parent=11 // pred_fallthru
        _
    $region12: #{block_forward.1} parent=5 // pred_fallthru
      _
    %p223 = scmp.lt.s32.totalorder %s12, 4
    // Predicated region
    $region25: #{block_forward.1} parent=5 // pred_check
      %p224 = pneg %p223
    $region26: #{block_forward.1} parent=5 // pred_check_branch
      %226 = sbr.rel (%p224) target = $region28
    $region27: #{block_forward.1} parent=5 // pred_region
      // Predicated region
      $region29: #{block_forward.1} parent=27 // pred_check
        %p227 = pneg %p46
      $region30: #{block_forward.1} parent=27 // pred_check_branch
        %229 = sbr.rel (%p227) target = $region32
      $region31: #{block_forward.1} parent=27 // pred_region
        %p230 = scmp.lt.s32.totalorder %s19, 1
        %s231 = scalar_select %p230, %s19, 1
        %p232 = scmp.lt.s32.totalorder %s20, 1
        %s233 = scalar_select %p232, %s20, 1
        %s234 = smul.addr %s231, 2
        %s235 = sadd.s32 %s233, %s234
        %s236 = smul.addr %s235, 8
        %s237 = scalar_lea.vmem %s0, %s236
      $region32: #{block_forward.1} parent=27 // pred_fallthru
        _
      // Predicated region
      $region33: #{block_forward.1} parent=27 // pred_check
        %p238 = pneg %p74
      $region34: #{block_forward.1} parent=27 // pred_check_branch
        %240 = sbr.rel (%p238) target = $region36
      $region35: #{block_forward.1} parent=27 // pred_region
        %p241 = scmp.lt.s32.totalorder %s19, 1
        %s242 = scalar_select %p241, %s19, 1
        %p243 = scmp.lt.s32.totalorder %s20, 1
        %s244 = scalar_select %p243, %s20, 1
        %s245 = smul.addr %s242, 2
        %s246 = sadd.s32 %s244, %s245
        %s247 = smul.addr %s246, 8
        %s248 = scalar_lea.vmem %s1, %s247
      $region36: #{block_forward.1} parent=27 // pred_fallthru
        _
      // Predicated region
      $region37: #{block_forward.1} parent=27 // pred_check
        %p249 = pneg %p102
      $region38: #{block_forward.1} parent=27 // pred_check_branch
        %251 = sbr.rel (%p249) target = $region40
      $region39: #{block_forward.1} parent=27 // pred_region
        %p252 = scmp.lt.s32.totalorder %s19, 1
        %s253 = scalar_select %p252, %s19, 1
        %p254 = scmp.lt.s32.totalorder %s20, 1
        %s255 = scalar_select %p254, %s20, 1
        %s256 = smul.addr %s253, 2
        %s257 = sadd.s32 %s255, %s256
        %s258 = smul.addr %s257, 8
        %s259 = scalar_lea.vmem %s2, %s258
      $region40: #{block_forward.1} parent=27 // pred_fallthru
        _
    $region28: #{block_forward.1} parent=5 // pred_fallthru
      _
    %p260 = scmp.le.s32.totalorder 1, %s12
    %p261 = scmp.lt.s32.totalorder %s12, 5
    %p262 = pnand %p260, %p261
    %p263 = pneg %p262
    // Predicated region
    $region41: #{block_forward.1} parent=5 // pred_check
      _
    $region42: #{block_forward.1} parent=5 // pred_check_branch
      %265 = sbr.rel (%p262) target = $region44
    $region43: #{block_forward.1} parent=5 // pred_region
      %s266 = ssub.s32 %s12, 1
      %p267 = scmp.lt.s32.totalorder %s21, 1
      %s268 = scalar_select %p267, %s21, 1
      %p269 = scmp.lt.s32.totalorder %s22, 1
      %s270 = scalar_select %p269, %s22, 1
      %s271 = smul.addr %s268, 2
      %s272 = sadd.s32 %s270, %s271
      %s273 = smul.addr %s272, 8
      %s274 = scalar_lea.vmem %s0, %s273
      %p275 = pneg %p52
      %p276 = pneg %p49
      %p277 = scmp.lt.s32.totalorder %s21, 1
      %s278 = scalar_select %p277, %s21, 1
      %p279 = scmp.lt.s32.totalorder %s22, 1
      %s280 = scalar_select %p279, %s22, 1
      %s281 = smul.addr %s278, 2
      %s282 = sadd.s32 %s280, %s281
      %s283 = smul.addr %s282, 8
      %s284 = scalar_lea.vmem %s1, %s283
      %p285 = pneg %p80
      %p286 = pneg %p77
      %p287 = scmp.lt.s32.totalorder %s21, 1
      %s288 = scalar_select %p287, %s21, 1
      %p289 = scmp.lt.s32.totalorder %s22, 1
      %s290 = scalar_select %p289, %s22, 1
      %s291 = smul.addr %s288, 2
      %s292 = sadd.s32 %s290, %s291
      %s293 = smul.addr %s292, 8
      %s294 = scalar_lea.vmem %s2, %s293
      %p295 = pneg %p108
      %p296 = pneg %p105
      %p297 = pneg %p129
      %p298 = pneg %p126
      %p299 = pneg %p150
      %p300 = pneg %p147
      %p301 = pneg %p171
      %p302 = pneg %p168
      %p303 = pneg %p199
      %p304 = pneg %p196
      %p305 = scmp.lt.s32.totalorder %s21, 1
      %s306 = scalar_select %p305, %s21, 1
      %p307 = scmp.lt.s32.totalorder %s22, 1
      %s308 = scalar_select %p307, %s22, 1
      %s309 = smul.addr %s306, 2
      %s310 = sadd.s32 %s308, %s309
      %s311 = smul.addr %s310, 4
      %s312 = scalar_lea.vmem %s6, %s311
      %p313 = scmp.lt.s32.totalorder %s21, 1
      %s314 = scalar_select %p313, %s21, 1
      %p315 = scmp.lt.s32.totalorder %s22, 1
      %s316 = scalar_select %p315, %s22, 1
      %s317 = smul.addr %s314, 2
      %s318 = sadd.s32 %s316, %s317
      %s319 = smul.addr %s318, 8
      %s320 = scalar_lea.vmem %s0, %s319
      %p321 = scmp.lt.s32.totalorder %s21, 1
      %s322 = scalar_select %p321, %s21, 1
      %p323 = scmp.lt.s32.totalorder %s22, 1
      %s324 = scalar_select %p323, %s22, 1
      %s325 = smul.addr %s322, 2
      %s326 = sadd.s32 %s324, %s325
      %s327 = smul.addr %s326, 8
      %s328 = scalar_lea.vmem %s1, %s327
      %p329 = scmp.lt.s32.totalorder %s21, 1
      %s330 = scalar_select %p329, %s21, 1
      %p331 = scmp.lt.s32.totalorder %s22, 1
      %s332 = scalar_select %p331, %s22, 1
      %s333 = smul.addr %s330, 2
      %s334 = sadd.s32 %s332, %s333
      %s335 = smul.addr %s334, 8
      %s336 = scalar_lea.vmem %s2, %s335
      %p337 = scmp.lt.s32.totalorder %s21, 1
      %s338 = scalar_select %p337, %s21, 1
      %p339 = scmp.lt.s32.totalorder %s22, 1
      %s340 = scalar_select %p339, %s22, 1
      %s341 = smul.addr %s338, 2
      %s342 = sadd.s32 %s340, %s341
      %s343 = smul.addr %s342, 4
      %s344 = scalar_lea.vmem %s6, %s343
      %v348 = vld [vmem:[%s320] sm:$0x3f]
      %v349 = vld [vmem:[%s328] sm:$0x3f]
      %v350 = vld [vmem:[%s336] sm:$0x3f]
      %vm351 = vcmask 912248
      %352 = vst.msk [vmem:[#allocation2] sm:$0x7] %vm351, 0
      %v353 = vpack.c.bf16 %v349, %v349
      %v355 = vunpack.c.l.b16 %v353
      %v356 = vpack.c.b16 %v355, %v355
      %357 = vrot.lane.b32.xlu0 %v356, 112
      %v358 = vpop.permute.xlu0 %357
      %vm360 = vcmask 1043328
      %361 = vst.msk [vmem:[#allocation2] sm:$0x7] %vm360, %v358
      %v362 = vpack.c.bf16 %v348, %v348
      %363 = vst [vmem:[#allocation2 + $0x4] sm:$0x7] %v362
      %v364 = vpack.c.bf16 %v350, %v350
      %vm365 = vcmask 124928
      %366 = vst.msk [vmem:[#allocation2 + $0x8] sm:$0x7] %vm365, %v364
      %vm367 = vcmask 133248
      %368 = vst.msk [vmem:[#allocation2 + $0x8] sm:$0x7] %vm367, 0
      %v369 = vld [vmem:[%s3] sm:$0x1]
      %vm370 = vcmp.gt.s32.totalorder %v369, 0
      %vm371 = vcmp.lt.s32.totalorder %v369, 15
      %v372 = vld [vmem:[#allocation2] sm:$0x77]
      %v373 = vsel %vm370, 1, 0
      %v374 = vlaneseq
      %v375 = vshrl.u32 %v374, 7
      %v376 = vsub.s32 0, %v375
      %v377 = vrot.slane %v373, %v376
      %vm378 = vcmp.eq.s32.totalorder %v377, 1
      %vm379 = vmpackc.low %vm378, %vm378
      %v380 = vsel %vm379, 65537, 0
      %381 = vrot.lane.b32.xlu0 %v380, 111
      %v382 = vpop.permute.xlu0 %381
      %v383 = vrot.slane %v382, 4
      %vm384 = vcmask 908288
      %v385 = vsel %vm384, %v383, %v382
      %vm386 = vcmp.ne.s16.totalorder %v385, 0
      %v387 = vsel %vm386, %v372, 0
      %v388 = vld [vmem:[%s4] sm:$0x3]
      %s389 = scalar_lea.vmem %s4, 2
      %v390 = vld [vmem:[%s389] sm:$0x3]
      %v392 = vunpack.c.l.b16 %v372
      %v393 = vunpack.c.h.b16 %v372
      %v394 = vpack.c.b16 %v392, %v392
      %v395 = vpack.c.b16 %v393, %v393
      %396 = vrot.lane.b32.xlu0 %v394, 16
      %v397 = vpop.permute.xlu0 %396
      %398 = vrot.lane.b32.xlu0 %v395, 16
      %v399 = vpop.permute.xlu0 %398
      %vm400 = vcmask 130048
      %v401 = vsel %vm400, %v397, %v399
      %vm402 = vcmask 48128
      %v404 = vsel %vm402, %v390, 0
      %vm406 = vcmask 1042432
      %v408 = vsel %vm406, %v401, 0
      %410 = vmatprep.subr.bf16.mxu0 0
      %411 = vmatpush1.bf16.msra.mxu0 %v408
      %412 = vmatprep.subr.bf16.mxu0 0
      %413 = vmatpush1.bf16.msra.mxu0 0
      %414 = vmatprep.subr.bf16.mxu0 0
      %415 = vmatpush1.bf16.msra.mxu0 0
      %416 = vmatprep.subr.bf16.mxu0 0
      %417 = vmatpush1.bf16.msra.mxu0 0
      %418 = vmatprep.subr.bf16.mxu0 0
      %419 = vmatpush1.bf16.msra.mxu0 0
      %420 = vmatprep.subr.bf16.mxu0 0
      %421 = vmatpush1.bf16.msra.mxu0 0
      %422 = vmatprep.subr.bf16.mxu0 0
      %423 = vmatpush1.bf16.msra.mxu0 0
      %424 = vmatprep.subr.bf16.mxu0 0
      %425 = vmatpush1.bf16.msra.mxu0 0
      %426 = vmatprep.subr.bf16.mxu0 0
      %427 = vmatpush1.bf16.msra.mxu0 0
      %428 = vmatprep.subr.bf16.mxu0 0
      %429 = vmatpush1.bf16.msra.mxu0 0
      %430 = vmatprep.subr.bf16.mxu0 0
      %431 = vmatpush1.bf16.msra.mxu0 0
      %432 = vmatprep.subr.bf16.mxu0 0
      %433 = vmatpush1.bf16.msra.mxu0 0
      %434 = vmatprep.subr.bf16.mxu0 0
      %435 = vmatpush1.bf16.msra.mxu0 0
      %436 = vmatprep.subr.bf16.mxu0 0
      %437 = vmatpush1.bf16.msra.mxu0 0
      %438 = vmatprep.subr.bf16.mxu0 0
      %439 = vmatpush1.bf16.msra.mxu0 0
      %440 = vmatprep.subr.bf16.mxu0 0
      %441 = vmatpush1.bf16.msra.mxu0 0
      %442 = vmatprep.mubr.bf16.mxu0 0
      %443 = vmatmul.mubr.bf16.gmra.mrb[0].mxu0 %v404
      %v444 = vpop.f32.mrb[0].mxu0
      %v445 = vadd.f32 0.0, %v444
      %v446 = vpop.f32.mrb[0].mxu0
      %v447 = vpop.f32.mrb[0].mxu0
      %v448 = vpop.f32.mrb[0].mxu0
      %449 = vdwg.mxu0
      %v451 = vunpack.c.l.b16 %v387
      %v452 = vunpack.c.h.b16 %v387
      %v453 = vpack.c.b16 %v451, %v451
      %v454 = vpack.c.b16 %v452, %v452
      %455 = vrot.lane.b32.xlu0 %v453, 17
      %v456 = vpop.permute.xlu0 %455
      %457 = vrot.lane.b32.xlu0 %v454, 17
      %v458 = vpop.permute.xlu0 %457
      %vm459 = vcmask 138240
      %v460 = vsel %vm459, %v456, %v458
      %v462 = vsel %vm402, %v388, 0
      %v465 = vsel %vm406, %v460, 0
      %467 = vmatprep.subr.bf16.mxu0 0
      %468 = vmatpush1.bf16.msra.mxu0 %v465
      %469 = vmatprep.subr.bf16.mxu0 0
      %470 = vmatpush1.bf16.msra.mxu0 0
      %471 = vmatprep.subr.bf16.mxu0 0
      %472 = vmatpush1.bf16.msra.mxu0 0
      %473 = vmatprep.subr.bf16.mxu0 0
      %474 = vmatpush1.bf16.msra.mxu0 0
      %475 = vmatprep.subr.bf16.mxu0 0
      %476 = vmatpush1.bf16.msra.mxu0 0
      %477 = vmatprep.subr.bf16.mxu0 0
      %478 = vmatpush1.bf16.msra.mxu0 0
      %479 = vmatprep.subr.bf16.mxu0 0
      %480 = vmatpush1.bf16.msra.mxu0 0
      %481 = vmatprep.subr.bf16.mxu0 0
      %482 = vmatpush1.bf16.msra.mxu0 0
      %483 = vmatprep.subr.bf16.mxu0 0
      %484 = vmatpush1.bf16.msra.mxu0 0
      %485 = vmatprep.subr.bf16.mxu0 0
      %486 = vmatpush1.bf16.msra.mxu0 0
      %487 = vmatprep.subr.bf16.mxu0 0
      %488 = vmatpush1.bf16.msra.mxu0 0
      %489 = vmatprep.subr.bf16.mxu0 0
      %490 = vmatpush1.bf16.msra.mxu0 0
      %491 = vmatprep.subr.bf16.mxu0 0
      %492 = vmatpush1.bf16.msra.mxu0 0
      %493 = vmatprep.subr.bf16.mxu0 0
      %494 = vmatpush1.bf16.msra.mxu0 0
      %495 = vmatprep.subr.bf16.mxu0 0
      %496 = vmatpush1.bf16.msra.mxu0 0
      %497 = vmatprep.subr.bf16.mxu0 0
      %498 = vmatpush1.bf16.msra.mxu0 0
      %499 = vmatprep.mubr.bf16.mxu0 0
      %500 = vmatmul.mubr.bf16.gmra.mrb[0].mxu0 %v462
      %v501 = vpop.f32.mrb[0].mxu0
      %v502 = vadd.f32 %v445, %v501
      %v503 = vpop.f32.mrb[0].mxu0
      %v504 = vpop.f32.mrb[0].mxu0
      %v505 = vpop.f32.mrb[0].mxu0
      %506 = vdwg.mxu0
      %v507 = vsel %vm371, 1, 0
      %v508 = vlaneseq
      %v509 = vshrl.u32 %v508, 7
      %v510 = vsub.s32 0, %v509
      %v511 = vrot.slane %v507, %v510
      %vm512 = vcmp.eq.s32.totalorder %v511, 1
      %vm513 = vmpackc.low %vm512, %vm512
      %v514 = vsel %vm513, 65537, 0
      %515 = vrot.lane.b32.xlu0 %v514, 113
      %v516 = vpop.permute.xlu0 %515
      %v517 = vrot.slane %v516, 4
      %vm518 = vcmask 924672
      %v519 = vsel %vm518, %v517, %v516
      %vm520 = vcmp.ne.s16.totalorder %v519, 0
      %v521 = vsel %vm520, %v372, 0
      %s522 = scalar_lea.vmem %s4, 4
      %v523 = vld [vmem:[%s522] sm:$0x3]
      %v525 = vunpack.c.l.b16 %v521
      %v526 = vunpack.c.h.b16 %v521
      %v527 = vpack.c.b16 %v525, %v525
      %v528 = vpack.c.b16 %v526, %v526
      %529 = vrot.lane.b32.xlu0 %v527, 15
      %v530 = vpop.permute.xlu0 %529
      %531 = vrot.lane.b32.xlu0 %v528, 15
      %v532 = vpop.permute.xlu0 %531
      %vm533 = vcmask 121856
      %v534 = vsel %vm533, %v530, %v532
      %v536 = vsel %vm402, %v523, 0
      %v539 = vsel %vm406, %v534, 0
      %541 = vmatprep.subr.bf16.mxu0 0
      %542 = vmatpush1.bf16.msra.mxu0 %v539
      %543 = vmatprep.subr.bf16.mxu0 0
      %544 = vmatpush1.bf16.msra.mxu0 0
      %545 = vmatprep.subr.bf16.mxu0 0
      %546 = vmatpush1.bf16.msra.mxu0 0
      %547 = vmatprep.subr.bf16.mxu0 0
      %548 = vmatpush1.bf16.msra.mxu0 0
      %549 = vmatprep.subr.bf16.mxu0 0
      %550 = vmatpush1.bf16.msra.mxu0 0
      %551 = vmatprep.subr.bf16.mxu0 0
      %552 = vmatpush1.bf16.msra.mxu0 0
      %553 = vmatprep.subr.bf16.mxu0 0
      %554 = vmatpush1.bf16.msra.mxu0 0
      %555 = vmatprep.subr.bf16.mxu0 0
      %556 = vmatpush1.bf16.msra.mxu0 0
      %557 = vmatprep.subr.bf16.mxu0 0
      %558 = vmatpush1.bf16.msra.mxu0 0
      %559 = vmatprep.subr.bf16.mxu0 0
      %560 = vmatpush1.bf16.msra.mxu0 0
      %561 = vmatprep.subr.bf16.mxu0 0
      %562 = vmatpush1.bf16.msra.mxu0 0
      %563 = vmatprep.subr.bf16.mxu0 0
      %564 = vmatpush1.bf16.msra.mxu0 0
      %565 = vmatprep.subr.bf16.mxu0 0
      %566 = vmatpush1.bf16.msra.mxu0 0
      %567 = vmatprep.subr.bf16.mxu0 0
      %568 = vmatpush1.bf16.msra.mxu0 0
      %569 = vmatprep.subr.bf16.mxu0 0
      %570 = vmatpush1.bf16.msra.mxu0 0
      %571 = vmatprep.subr.bf16.mxu0 0
      %572 = vmatpush1.bf16.msra.mxu0 0
      %573 = vmatprep.mubr.bf16.mxu0 0
      %574 = vmatmul.mubr.bf16.gmra.mrb[0].mxu0 %v536
      %v575 = vpop.f32.mrb[0].mxu0
      %v576 = vadd.f32 0.0, %v575
      %v577 = vpop.f32.mrb[0].mxu0
      %v578 = vpop.f32.mrb[0].mxu0
      %v579 = vpop.f32.mrb[0].mxu0
      %580 = vdwg.mxu0
      %v581 = vadd.f32 %v502, %v576
      %582 = vrot.lane.b32.xlu0 %v380, 127
      %v583 = vpop.permute.xlu0 %582
      %v584 = vrot.slane %v583, 4
      %vm585 = vcmask 1039360
      %v586 = vsel %vm585, %v584, %v583
      %vm587 = vcmp.ne.s16.totalorder %v586, 0
      %v588 = vsel %vm587, %v372, 0
      %s589 = scalar_lea.vmem %s4, 6
      %v590 = vld [vmem:[%s589] sm:$0x3]
      %v592 = vunpack.c.l.b16 %v588
      %v593 = vunpack.c.h.b16 %v588
      %v594 = vpack.c.b16 %v592, %v592
      %v595 = vpack.c.b16 %v593, %v593
      %596 = vrot.lane.b32.xlu0 %v594, 1
      %v597 = vpop.permute.xlu0 %596
      %598 = vrot.lane.b32.xlu0 %v595, 1
      %v599 = vpop.permute.xlu0 %598
      %vm600 = vcmask 7168
      %v601 = vsel %vm600, %v597, %v599
      %v603 = vsel %vm402, %v590, 0
      %v606 = vsel %vm406, %v601, 0
      %608 = vmatprep.subr.bf16.mxu0 0
      %609 = vmatpush1.bf16.msra.mxu0 %v606
      %610 = vmatprep.subr.bf16.mxu0 0
      %611 = vmatpush1.bf16.msra.mxu0 0
      %612 = vmatprep.subr.bf16.mxu0 0
      %613 = vmatpush1.bf16.msra.mxu0 0
      %614 = vmatprep.subr.bf16.mxu0 0
      %615 = vmatpush1.bf16.msra.mxu0 0
      %616 = vmatprep.subr.bf16.mxu0 0
      %617 = vmatpush1.bf16.msra.mxu0 0
      %618 = vmatprep.subr.bf16.mxu0 0
      %619 = vmatpush1.bf16.msra.mxu0 0
      %620 = vmatprep.subr.bf16.mxu0 0
      %621 = vmatpush1.bf16.msra.mxu0 0
      %622 = vmatprep.subr.bf16.mxu0 0
      %623 = vmatpush1.bf16.msra.mxu0 0
      %624 = vmatprep.subr.bf16.mxu0 0
      %625 = vmatpush1.bf16.msra.mxu0 0
      %626 = vmatprep.subr.bf16.mxu0 0
      %627 = vmatpush1.bf16.msra.mxu0 0
      %628 = vmatprep.subr.bf16.mxu0 0
      %629 = vmatpush1.bf16.msra.mxu0 0
      %630 = vmatprep.subr.bf16.mxu0 0
      %631 = vmatpush1.bf16.msra.mxu0 0
      %632 = vmatprep.subr.bf16.mxu0 0
      %633 = vmatpush1.bf16.msra.mxu0 0
      %634 = vmatprep.subr.bf16.mxu0 0
      %635 = vmatpush1.bf16.msra.mxu0 0
      %636 = vmatprep.subr.bf16.mxu0 0
      %637 = vmatpush1.bf16.msra.mxu0 0
      %638 = vmatprep.subr.bf16.mxu0 0
      %639 = vmatpush1.bf16.msra.mxu0 0
      %640 = vmatprep.mubr.bf16.mxu0 0
      %641 = vmatmul.mubr.bf16.gmra.mrb[0].mxu0 %v603
      %v642 = vpop.f32.mrb[0].mxu0
      %v643 = vadd.f32 0.0, %v642
      %v644 = vpop.f32.mrb[0].mxu0
      %v645 = vpop.f32.mrb[0].mxu0
      %v646 = vpop.f32.mrb[0].mxu0
      %647 = vdwg.mxu0
      %v648 = vadd.f32 %v581, %v643
      %v649 = vld [vmem:[#allocation2 + $0x4] sm:$0x7]
      %s650 = scalar_lea.vmem %s4, 8
      %v651 = vld [vmem:[%s650] sm:$0x3]
      %v653 = vsel %vm402, %v651, 0
      %v656 = vsel %vm406, %v649, 0
      %658 = vmatprep.subr.bf16.mxu0 0
      %659 = vmatpush1.bf16.msra.mxu0 %v656
      %660 = vmatprep.subr.bf16.mxu0 0
      %661 = vmatpush1.bf16.msra.mxu0 0
      %662 = vmatprep.subr.bf16.mxu0 0
      %663 = vmatpush1.bf16.msra.mxu0 0
      %664 = vmatprep.subr.bf16.mxu0 0
      %665 = vmatpush1.bf16.msra.mxu0 0
      %666 = vmatprep.subr.bf16.mxu0 0
      %667 = vmatpush1.bf16.msra.mxu0 0
      %668 = vmatprep.subr.bf16.mxu0 0
      %669 = vmatpush1.bf16.msra.mxu0 0
      %670 = vmatprep.subr.bf16.mxu0 0
      %671 = vmatpush1.bf16.msra.mxu0 0
      %672 = vmatprep.subr.bf16.mxu0 0
      %673 = vmatpush1.bf16.msra.mxu0 0
      %674 = vmatprep.subr.bf16.mxu0 0
      %675 = vmatpush1.bf16.msra.mxu0 0
      %676 = vmatprep.subr.bf16.mxu0 0
      %677 = vmatpush1.bf16.msra.mxu0 0
      %678 = vmatprep.subr.bf16.mxu0 0
      %679 = vmatpush1.bf16.msra.mxu0 0
      %680 = vmatprep.subr.bf16.mxu0 0
      %681 = vmatpush1.bf16.msra.mxu0 0
      %682 = vmatprep.subr.bf16.mxu0 0
      %683 = vmatpush1.bf16.msra.mxu0 0
      %684 = vmatprep.subr.bf16.mxu0 0
      %685 = vmatpush1.bf16.msra.mxu0 0
      %686 = vmatprep.subr.bf16.mxu0 0
      %687 = vmatpush1.bf16.msra.mxu0 0
      %688 = vmatprep.subr.bf16.mxu0 0
      %689 = vmatpush1.bf16.msra.mxu0 0
      %690 = vmatprep.mubr.bf16.mxu0 0
      %691 = vmatmul.mubr.bf16.gmra.mrb[0].mxu0 %v653
      %v692 = vpop.f32.mrb[0].mxu0
      %v693 = vadd.f32 0.0, %v692
      %v694 = vpop.f32.mrb[0].mxu0
      %v695 = vpop.f32.mrb[0].mxu0
      %v696 = vpop.f32.mrb[0].mxu0
      %697 = vdwg.mxu0
      %v698 = vadd.f32 %v648, %v693
      %v699 = vld [vmem:[#allocation2 + $0x4] sm:$0x77]
      %700 = vrot.lane.b32.xlu0 %v514, 1
      %v701 = vpop.permute.xlu0 %700
      %v702 = vrot.slane %v701, 4
      %v703 = vsel %vm600, %v702, %v701
      %vm704 = vcmp.ne.s16.totalorder %v703, 0
      %v705 = vsel %vm704, %v699, 0
      %s706 = scalar_lea.vmem %s4, 10
      %v707 = vld [vmem:[%s706] sm:$0x3]
      %v709 = vunpack.c.l.b16 %v705
      %v710 = vunpack.c.h.b16 %v705
      %v711 = vpack.c.b16 %v709, %v709
      %v712 = vpack.c.b16 %v710, %v710
      %713 = vrot.lane.b32.xlu0 %v711, 127
      %v714 = vpop.permute.xlu0 %713
      %715 = vrot.lane.b32.xlu0 %v712, 127
      %v716 = vpop.permute.xlu0 %715
      %v717 = vsel %vm585, %v714, %v716
      %v719 = vsel %vm402, %v707, 0
      %v722 = vsel %vm406, %v717, 0
      %724 = vmatprep.subr.bf16.mxu0 0
      %725 = vmatpush1.bf16.msra.mxu0 %v722
      %726 = vmatprep.subr.bf16.mxu0 0
      %727 = vmatpush1.bf16.msra.mxu0 0
      %728 = vmatprep.subr.bf16.mxu0 0
      %729 = vmatpush1.bf16.msra.mxu0 0
      %730 = vmatprep.subr.bf16.mxu0 0
      %731 = vmatpush1.bf16.msra.mxu0 0
      %732 = vmatprep.subr.bf16.mxu0 0
      %733 = vmatpush1.bf16.msra.mxu0 0
      %734 = vmatprep.subr.bf16.mxu0 0
      %735 = vmatpush1.bf16.msra.mxu0 0
      %736 = vmatprep.subr.bf16.mxu0 0
      %737 = vmatpush1.bf16.msra.mxu0 0
      %738 = vmatprep.subr.bf16.mxu0 0
      %739 = vmatpush1.bf16.msra.mxu0 0
      %740 = vmatprep.subr.bf16.mxu0 0
      %741 = vmatpush1.bf16.msra.mxu0 0
      %742 = vmatprep.subr.bf16.mxu0 0
      %743 = vmatpush1.bf16.msra.mxu0 0
      %744 = vmatprep.subr.bf16.mxu0 0
      %745 = vmatpush1.bf16.msra.mxu0 0
      %746 = vmatprep.subr.bf16.mxu0 0
      %747 = vmatpush1.bf16.msra.mxu0 0
      %748 = vmatprep.subr.bf16.mxu0 0
      %749 = vmatpush1.bf16.msra.mxu0 0
      %750 = vmatprep.subr.bf16.mxu0 0
      %751 = vmatpush1.bf16.msra.mxu0 0
      %752 = vmatprep.subr.bf16.mxu0 0
      %753 = vmatpush1.bf16.msra.mxu0 0
      %754 = vmatprep.subr.bf16.mxu0 0
      %755 = vmatpush1.bf16.msra.mxu0 0
      %756 = vmatprep.mubr.bf16.mxu0 0
      %757 = vmatmul.mubr.bf16.gmra.mrb[0].mxu0 %v719
      %v758 = vpop.f32.mrb[0].mxu0
      %v759 = vadd.f32 0.0, %v758
      %v760 = vpop.f32.mrb[0].mxu0
      %v761 = vpop.f32.mrb[0].mxu0
      %v762 = vpop.f32.mrb[0].mxu0
      %763 = vdwg.mxu0
      %v764 = vadd.f32 %v698, %v759
      %765 = vrot.lane.b32.xlu0 %v380, 15
      %v766 = vpop.permute.xlu0 %765
      %v767 = vrot.slane %v766, 4
      %v768 = vsel %vm533, %v767, %v766
      %vm769 = vcmp.ne.s16.totalorder %v768, 0
      %v770 = vsel %vm769, %v699, 0
      %s771 = scalar_lea.vmem %s4, 12
      %v772 = vld [vmem:[%s771] sm:$0x3]
      %v774 = vunpack.c.l.b16 %v770
      %v775 = vunpack.c.h.b16 %v770
      %v776 = vpack.c.b16 %v774, %v774
      %v777 = vpack.c.b16 %v775, %v775
      %778 = vrot.lane.b32.xlu0 %v776, 113
      %v779 = vpop.permute.xlu0 %778
      %780 = vrot.lane.b32.xlu0 %v777, 113
      %v781 = vpop.permute.xlu0 %780
      %v782 = vsel %vm518, %v779, %v781
      %v784 = vsel %vm402, %v772, 0
      %v787 = vsel %vm406, %v782, 0
      %789 = vmatprep.subr.bf16.mxu0 0
      %790 = vmatpush1.bf16.msra.mxu0 %v787
      %791 = vmatprep.subr.bf16.mxu0 0
      %792 = vmatpush1.bf16.msra.mxu0 0
      %793 = vmatprep.subr.bf16.mxu0 0
      %794 = vmatpush1.bf16.msra.mxu0 0
      %795 = vmatprep.subr.bf16.mxu0 0
      %796 = vmatpush1.bf16.msra.mxu0 0
      %797 = vmatprep.subr.bf16.mxu0 0
      %798 = vmatpush1.bf16.msra.mxu0 0
      %799 = vmatprep.subr.bf16.mxu0 0
      %800 = vmatpush1.bf16.msra.mxu0 0
      %801 = vmatprep.subr.bf16.mxu0 0
      %802 = vmatpush1.bf16.msra.mxu0 0
      %803 = vmatprep.subr.bf16.mxu0 0
      %804 = vmatpush1.bf16.msra.mxu0 0
      %805 = vmatprep.subr.bf16.mxu0 0
      %806 = vmatpush1.bf16.msra.mxu0 0
      %807 = vmatprep.subr.bf16.mxu0 0
      %808 = vmatpush1.bf16.msra.mxu0 0
      %809 = vmatprep.subr.bf16.mxu0 0
      %810 = vmatpush1.bf16.msra.mxu0 0
      %811 = vmatprep.subr.bf16.mxu0 0
      %812 = vmatpush1.bf16.msra.mxu0 0
      %813 = vmatprep.subr.bf16.mxu0 0
      %814 = vmatpush1.bf16.msra.mxu0 0
      %815 = vmatprep.subr.bf16.mxu0 0
      %816 = vmatpush1.bf16.msra.mxu0 0
      %817 = vmatprep.subr.bf16.mxu0 0
      %818 = vmatpush1.bf16.msra.mxu0 0
      %819 = vmatprep.subr.bf16.mxu0 0
      %820 = vmatpush1.bf16.msra.mxu0 0
      %821 = vmatprep.mubr.bf16.mxu0 0
      %822 = vmatmul.mubr.bf16.gmra.mrb[0].mxu0 %v784
      %v823 = vpop.f32.mrb[0].mxu0
      %v824 = vadd.f32 0.0, %v823
      %v825 = vpop.f32.mrb[0].mxu0
      %v826 = vpop.f32.mrb[0].mxu0
      %v827 = vpop.f32.mrb[0].mxu0
      %828 = vdwg.mxu0
      %v829 = vadd.f32 %v764, %v824
      %s830 = scalar_lea.vmem %s4, 14
      %v831 = vld [vmem:[%s830] sm:$0x3]
      %v833 = vunpack.c.l.b16 %v699
      %v834 = vunpack.c.h.b16 %v699
      %v835 = vpack.c.b16 %v833, %v833
      %v836 = vpack.c.b16 %v834, %v834
      %837 = vrot.lane.b32.xlu0 %v835, 112
      %v838 = vpop.permute.xlu0 %837
      %839 = vrot.lane.b32.xlu0 %v836, 112
      %v840 = vpop.permute.xlu0 %839
      %vm841 = vcmask 916480
      %v842 = vsel %vm841, %v838, %v840
      %v844 = vsel %vm402, %v831, 0
      %v847 = vsel %vm406, %v842, 0
      %849 = vmatprep.subr.bf16.mxu0 0
      %850 = vmatpush1.bf16.msra.mxu0 %v847
      %851 = vmatprep.subr.bf16.mxu0 0
      %852 = vmatpush1.bf16.msra.mxu0 0
      %853 = vmatprep.subr.bf16.mxu0 0
      %854 = vmatpush1.bf16.msra.mxu0 0
      %855 = vmatprep.subr.bf16.mxu0 0
      %856 = vmatpush1.bf16.msra.mxu0 0
      %857 = vmatprep.subr.bf16.mxu0 0
      %858 = vmatpush1.bf16.msra.mxu0 0
      %859 = vmatprep.subr.bf16.mxu0 0
      %860 = vmatpush1.bf16.msra.mxu0 0
      %861 = vmatprep.subr.bf16.mxu0 0
      %862 = vmatpush1.bf16.msra.mxu0 0
      %863 = vmatprep.subr.bf16.mxu0 0
      %864 = vmatpush1.bf16.msra.mxu0 0
      %865 = vmatprep.subr.bf16.mxu0 0
      %866 = vmatpush1.bf16.msra.mxu0 0
      %867 = vmatprep.subr.bf16.mxu0 0
      %868 = vmatpush1.bf16.msra.mxu0 0
      %869 = vmatprep.subr.bf16.mxu0 0
      %870 = vmatpush1.bf16.msra.mxu0 0
      %871 = vmatprep.subr.bf16.mxu0 0
      %872 = vmatpush1.bf16.msra.mxu0 0
      %873 = vmatprep.subr.bf16.mxu0 0
      %874 = vmatpush1.bf16.msra.mxu0 0
      %875 = vmatprep.subr.bf16.mxu0 0
      %876 = vmatpush1.bf16.msra.mxu0 0
      %877 = vmatprep.subr.bf16.mxu0 0
      %878 = vmatpush1.bf16.msra.mxu0 0
      %879 = vmatprep.subr.bf16.mxu0 0
      %880 = vmatpush1.bf16.msra.mxu0 0
      %881 = vmatprep.mubr.bf16.mxu0 0
      %882 = vmatmul.mubr.bf16.gmra.mrb[0].mxu0 %v844
      %v883 = vpop.f32.mrb[0].mxu0
      %v884 = vadd.f32 0.0, %v883
      %v885 = vpop.f32.mrb[0].mxu0
      %v886 = vpop.f32.mrb[0].mxu0
      %v887 = vpop.f32.mrb[0].mxu0
      %888 = vdwg.mxu0
      %v889 = vadd.f32 %v829, %v884
      %890 = vrot.lane.b32.xlu0 %v514, 17
      %v891 = vpop.permute.xlu0 %890
      %v892 = vrot.slane %v891, 4
      %v893 = vsel %vm459, %v892, %v891
      %vm894 = vcmp.ne.s16.totalorder %v893, 0
      %v895 = vsel %vm894, %v699, 0
      %s896 = scalar_lea.vmem %s4, 16
      %v897 = vld [vmem:[%s896] sm:$0x3]
      %v899 = vunpack.c.l.b16 %v895
      %v900 = vunpack.c.h.b16 %v895
      %v901 = vpack.c.b16 %v899, %v899
      %v902 = vpack.c.b16 %v900, %v900
      %903 = vrot.lane.b32.xlu0 %v901, 111
      %v904 = vpop.permute.xlu0 %903
      %905 = vrot.lane.b32.xlu0 %v902, 111
      %v906 = vpop.permute.xlu0 %905
      %v907 = vsel %vm384, %v904, %v906
      %v909 = vsel %vm402, %v897, 0
      %v912 = vsel %vm406, %v907, 0
      %914 = vmatprep.subr.bf16.mxu0 0
      %915 = vmatpush1.bf16.msra.mxu0 %v912
      %916 = vmatprep.subr.bf16.mxu0 0
      %917 = vmatpush1.bf16.msra.mxu0 0
      %918 = vmatprep.subr.bf16.mxu0 0
      %919 = vmatpush1.bf16.msra.mxu0 0
      %920 = vmatprep.subr.bf16.mxu0 0
      %921 = vmatpush1.bf16.msra.mxu0 0
      %922 = vmatprep.subr.bf16.mxu0 0
      %923 = vmatpush1.bf16.msra.mxu0 0
      %924 = vmatprep.subr.bf16.mxu0 0
      %925 = vmatpush1.bf16.msra.mxu0 0
      %926 = vmatprep.subr.bf16.mxu0 0
      %927 = vmatpush1.bf16.msra.mxu0 0
      %928 = vmatprep.subr.bf16.mxu0 0
      %929 = vmatpush1.bf16.msra.mxu0 0
      %930 = vmatprep.subr.bf16.mxu0 0
      %931 = vmatpush1.bf16.msra.mxu0 0
      %932 = vmatprep.subr.bf16.mxu0 0
      %933 = vmatpush1.bf16.msra.mxu0 0
      %934 = vmatprep.subr.bf16.mxu0 0
      %935 = vmatpush1.bf16.msra.mxu0 0
      %936 = vmatprep.subr.bf16.mxu0 0
      %937 = vmatpush1.bf16.msra.mxu0 0
      %938 = vmatprep.subr.bf16.mxu0 0
      %939 = vmatpush1.bf16.msra.mxu0 0
      %940 = vmatprep.subr.bf16.mxu0 0
      %941 = vmatpush1.bf16.msra.mxu0 0
      %942 = vmatprep.subr.bf16.mxu0 0
      %943 = vmatpush1.bf16.msra.mxu0 0
      %944 = vmatprep.subr.bf16.mxu0 0
      %945 = vmatpush1.bf16.msra.mxu0 0
      %946 = vmatprep.mubr.bf16.mxu0 0
      %947 = vmatmul.mubr.bf16.gmra.mrb[0].mxu0 %v909
      %v948 = vpop.f32.mrb[0].mxu0
      %v949 = vadd.f32 0.0, %v948
      %v950 = vpop.f32.mrb[0].mxu0
      %v951 = vpop.f32.mrb[0].mxu0
      %v952 = vpop.f32.mrb[0].mxu0
      %953 = vdwg.mxu0
      %v954 = vadd.f32 %v889, %v949
      %v955 = vld [vmem:[%s5] sm:$0xf]
      %957 = vset.pattern.permute.xlu0 0
      %958 = vperm.xlu0 %957, %v955
      %v959 = vpop.permute.xlu0 %958
      %v961 = vadd.f32 %v954, %v959
      %v962 = vmax.f32 %v961, 0.0
      %v963 = vadd.f32 %v962, %v348
      %964 = vst [vmem:[%s344] sm:$0xf] %v963
      %p965 = scmp.lt.s32.totalorder %s21, 1
      %s966 = scalar_select %p965, %s21, 1
      %p967 = scmp.lt.s32.totalorder %s22, 1
      %s968 = scalar_select %p967, %s22, 1
      %s969 = smul.addr %s966, 2
      %s970 = sadd.s32 %s968, %s969
      %s971 = smul.addr %s970, 4
      %s972 = scalar_lea.vmem %s6, %s971
      // Predicated region
      $region45: #{block_forward.1} parent=43 // pred_check
        %p973 = pneg %p196
      $region46: #{block_forward.1} parent=43 // pred_check_branch
        %975 = sbr.rel (%p973) target = $region48
      $region47: #{block_forward.1} parent=43 // pred_region
        _
      $region48: #{block_forward.1} parent=43 // pred_fallthru
        _
    $region44: #{block_forward.1} parent=5 // pred_fallthru
      _
    %p976 = scmp.le.s32.totalorder 2, %s12
    // Predicated region
    $region49: #{block_forward.1} parent=5 // pred_check
      %p977 = pneg %p976
    $region50: #{block_forward.1} parent=5 // pred_check_branch
      %979 = sbr.rel (%p977) target = $region52
    $region51: #{block_forward.1} parent=5 // pred_region
      %s980 = ssub.s32 %s12, 2
      // Predicated region
      $region53: #{block_forward.1} parent=51 // pred_check
        %p981 = pneg %p202
      $region54: #{block_forward.1} parent=51 // pred_check_branch
        %983 = sbr.rel (%p981) target = $region56
      $region55: #{block_forward.1} parent=51 // pred_region
        %p984 = scmp.lt.s32.totalorder %s23, 1
        %s985 = scalar_select %p984, %s23, 1
        %p986 = scmp.lt.s32.totalorder %s24, 1
        %s987 = scalar_select %p986, %s24, 1
        %s988 = smul.addr %s985, 2
        %s989 = sadd.s32 %s987, %s988
        %s990 = smul.addr %s989, 4
        %s991 = scalar_lea.vmem %s6, %s990
      $region56: #{block_forward.1} parent=51 // pred_fallthru
        _
    $region52: #{block_forward.1} parent=5 // pred_fallthru
      _
  $region6: #{block_forward.1} parent=0 // loop_footer
    %s16 = sadd.s32 1, %s12
  $region7: #{block_forward.1} parent=0 // loop_footer_branch
    %11 = sbr.rel target = $region3
  $region8: #{block_forward.1} parent=0 // loop_exit
    _

</llo_original>
